<compile_context>
chip_gen: v5e
topology: v5e:2x2
jax: 0.10.0
libtpu: 0.0.40
codegen_flags: <defaults>
</compile_context>

<pallas_src>
import functools
import math

import jax
import jax.numpy as jnp
from jax.experimental import pallas as pl
from jax.experimental.pallas import tpu as pltpu


def make_positional_encoding(max_len: int, d_model: int, dtype=jnp.float32):
    """Identical to PositionalEncoding.__init__: buffer of shape (max_len, 1, d_model)."""
    position = jnp.arange(max_len, dtype=jnp.float32)[:, None]              # (max_len, 1)
    div_term = jnp.exp(
        jnp.arange(0, d_model, 2, dtype=jnp.float32) * (-math.log(10000.0) / d_model)
    )                                                                        # (d_model//2,)
    ang = position * div_term                                                # (max_len, d_model//2)
    pe = jnp.zeros((max_len, d_model), jnp.float32)
    pe = pe.at[:, 0::2].set(jnp.sin(ang))
    pe = pe.at[:, 1::2].set(jnp.cos(ang))
    # pe.unsqueeze(0).transpose(0, 1) -> (max_len, 1, d_model)
    return pe[:, None, :].astype(dtype)


def _pe_add_kernel(x_ref, pe_ref, o_ref, *, batch: int):
    # x_ref/o_ref block: (ts, B*D) lane-dense; pe_ref block: (ts, D) in f32.
    pe_tile = pe_ref[...].astype(x_ref.dtype)        # cast fused into the kernel
    if batch > 1:
        # Broadcast pe across the batch dim of the flattened lane axis:
        # result[:, b*D + d] = pe[:, d].
        pe_tile = jnp.tile(pe_tile, (1, batch))
    o_ref[...] = x_ref[...] + pe_tile


_VMEM_PIPELINE_BUDGET = 24 * 1024 * 1024   # target double-buffered I/O footprint
_VMEM_LIMIT_BYTES = 40 * 1024 * 1024       # raised scoped limit; safe on v7x's 64 MiB VMEM
_TINY_INPUT_BYTES = 128 * 1024             # below this, plain JAX beats kernel dispatch


def _choose_seq_tile(seq_len: int, bytes_per_row: int) -> int:
    """Rows per block: as large as the VMEM budget allows, >=2 grid steps if possible."""
    max_rows = max(1, _VMEM_PIPELINE_BUDGET // (2 * bytes_per_row))  # 2x: double-buffer
    if seq_len > 64:
        max_rows = min(max_rows, -(-seq_len // 2))   # keep >=2 steps (v7x megacore)
    else:
        max_rows = min(max_rows, seq_len)
    ts = (max_rows // 32) * 32                       # sublane-safe for f32/bf16/int8
    if ts == 0 or ts >= seq_len:
        return seq_len                               # full extent is always a legal block dim
    return ts


def positional_encoding_forward(x: jax.Array, pe: jax.Array, *, force_pallas: bool = False):
    """x: (S, B, D); pe: (max_len, 1, D) f32 buffer. Returns x + pe[:S] (eval-mode dropout)."""
    S, B, D = x.shape

    if not force_pallas and x.size * x.dtype.itemsize < _TINY_INPUT_BYTES:
        # Dispatch + per-step overhead would dwarf the work; let XLA fuse the add.
        return x + pe[:S].astype(x.dtype)

    x2d = x.reshape(S, B * D)                        # free row-major flatten -> lane-dense
    pe2d = pe.reshape(pe.shape[0], D)                # (max_len, D); free (middle dim is 1)

    # x row + out row (x.dtype) + pe row (f32), double-buffered by the pipeline.
    bytes_per_row = 2 * B * D * x.dtype.itemsize + D * pe.dtype.itemsize
    ts = _choose_seq_tile(S, bytes_per_row)

    out2d = pl.pallas_call(
        functools.partial(_pe_add_kernel, batch=B),
        out_shape=jax.ShapeDtypeStruct((S, B * D), x.dtype),
        grid_spec=pltpu.PrefetchScalarGridSpec(
            num_scalar_prefetch=0,
            grid=(pl.cdiv(S, ts),),
            in_specs=[
                pl.BlockSpec((ts, B * D), lambda i: (i, 0)),
                pl.BlockSpec((ts, D), lambda i: (i, 0)),   # slices pe[:S] via the grid
            ],
            out_specs=pl.BlockSpec((ts, B * D), lambda i: (i, 0)),
        ),
        compiler_params=pltpu.CompilerParams(
            dimension_semantics=("parallel",),
            vmem_limit_bytes=_VMEM_LIMIT_BYTES,
        ),
        input_output_aliases={0: 0},                 # in-place add: output reuses x's buffer
    )(x2d, pe2d)
    return out2d.reshape(S, B, D)


if __name__ == "__main__":
    key = jax.random.PRNGKey(0)

    # Small but kernel-meaningful shapes in the module's (seq, batch, d_model) layout;
    # d_model a multiple of 128 keeps the flattened blocks lane-dense.
    seq_len, batch, d_model = 256, 4, 256
    max_len = 512

    x = jax.random.normal(key, (seq_len, batch, d_model), dtype=jnp.float32)
    pe = make_positional_encoding(max_len, d_model)

    y = jax.block_until_ready(positional_encoding_forward(x, pe))
    y_ref = x + pe[:seq_len].astype(x.dtype)
    assert y.shape == (seq_len, batch, d_model)
    assert jnp.allclose(y, y_ref, atol=1e-6, rtol=1e-6)

    # bf16 I/O path (halves HBM traffic on v6e/v7x); pe stays f32 in HBM, cast in-kernel.
    xb = x.astype(jnp.bfloat16)
    yb = jax.block_until_ready(positional_encoding_forward(xb, pe))
    yb_ref = xb + pe[:seq_len].astype(jnp.bfloat16)
    assert yb.dtype == jnp.bfloat16
    assert jnp.allclose(yb.astype(jnp.float32), yb_ref.astype(jnp.float32),
                        atol=1e-2, rtol=1e-2)

    # Batch==1 path (what ABrainV1.generate uses) through the Pallas kernel.
    x1 = jax.random.normal(key, (seq_len, 1, d_model), dtype=jnp.float32)
    y1 = jax.block_until_ready(positional_encoding_forward(x1, pe, force_pallas=True))
    assert jnp.allclose(y1, x1 + pe[:seq_len], atol=1e-6, rtol=1e-6)

    # Tiny-input fast path (plain JAX) keeps identical semantics.
    xt = jax.random.normal(key, (8, 2, 32), dtype=jnp.float32)
    pet = make_positional_encoding(64, 32)
    yt = jax.block_until_ready(positional_encoding_forward(xt, pet))
    assert jnp.allclose(yt, xt + pet[:8], atol=1e-6, rtol=1e-6)

    # Pallas path also exercised at a small, non-tile-aligned shape (partial last block).
    xo = jax.random.normal(key, (40, 2, 32), dtype=jnp.float32)
    yo = jax.block_until_ready(positional_encoding_forward(xo, pet, force_pallas=True))
    assert jnp.allclose(yo, xo + pet[:40], atol=1e-6, rtol=1e-6)

    print("KERNEL_OK")
</pallas_src>

<mosaic_0001>
module attributes {stable_mosaic.version = 11 : i64} {
  func.func @_pe_add_kernel(%arg0: i32, %arg1: memref<128x1024xf32, #tpu.memory_space<vmem>>, %arg2: memref<128x256xf32, #tpu.memory_space<vmem>>, %arg3: memref<128x1024xf32, #tpu.memory_space<vmem>>) attributes {dimension_semantics = [#tpu.dimension_semantics<parallel>], iteration_bounds = array<i64: 2>, scalar_prefetch = 0 : i64, scratch_operands = 0 : i64, tpu.core_type = #tpu.core_type<tc>, window_params = [{transform_indices = @transform_0, window_bounds = array<i64: 128, 1024>}, {transform_indices = @transform_1, window_bounds = array<i64: 128, 256>}, {transform_indices = @transform_2, window_bounds = array<i64: 128, 1024>}]} {
    %c0 = arith.constant 0 : index
    %c0_0 = arith.constant 0 : index
    %0 = vector.load %arg2[%c0, %c0_0] : memref<128x256xf32, #tpu.memory_space<vmem>>, vector<128x256xf32>
    %1 = tpu.concatenate %0, %0, %0, %0 in 1 : vector<128x256xf32>, vector<128x256xf32>, vector<128x256xf32>, vector<128x256xf32> -> vector<128x1024xf32>
    %c0_1 = arith.constant 0 : index
    %c0_2 = arith.constant 0 : index
    %2 = vector.load %arg1[%c0_1, %c0_2] : memref<128x1024xf32, #tpu.memory_space<vmem>>, vector<128x1024xf32>
    %3 = arith.addf %2, %1 : vector<128x1024xf32>
    %c0_3 = arith.constant 0 : index
    %c0_4 = arith.constant 0 : index
    %4 = vector.load %arg3[%c0_3, %c0_4] : memref<128x1024xf32, #tpu.memory_space<vmem>>, vector<128x1024xf32>
    tpu.vector_store %arg3[%c0_3, %c0_4], %3 {strides = array<i32>} : memref<128x1024xf32, #tpu.memory_space<vmem>>, vector<128x1024xf32>,
    return
  }
  func.func @transform_0(%arg0: i32) -> (i32, i32) {
    %c0_i32 = arith.constant 0 : i32
    %c0_i32_0 = arith.constant 0 : i32
    return %arg0, %c0_i32 : i32, i32
  }
  func.func @transform_1(%arg0: i32) -> (i32, i32) {
    %c0_i32 = arith.constant 0 : i32
    %c0_i32_0 = arith.constant 0 : i32
    return %arg0, %c0_i32 : i32, i32
  }
  func.func @transform_2(%arg0: i32) -> (i32, i32) {
    %c0_i32 = arith.constant 0 : i32
    %c0_i32_0 = arith.constant 0 : i32
    return %arg0, %c0_i32 : i32, i32
  }
}

</mosaic_0001>

<llo_original>
// kernel: tpu_custom_call.1
$region0: #{tpu_custom_call.1}
  #allocation0 [shape = 'u32[]', space=smem, size = 0x4, offset = 0x4, fixed_abs, tag = 'smem constant byte address 0x4 - core index']
  #allocation1 [shape = 'u32[72,128]{1,0:T(1,128)}', space=vmem, size = 0x9000, scoped, tag = 'internal scratch']
  %s0 = inlined_call_operand.hbm [shape: f32[256,1024], index: 0, kind: input, shape index: {}, may-alias: {0,2}]
  %s1 = inlined_call_operand.vmem [shape: f32[512,256], index: 1, kind: input, shape index: {}]
  %s2 = inlined_call_operand.hbm [shape: f32[256,1024], index: 2, kind: output, shape index: {}, may-alias: {0,2}]
  %s3 = sld [smem:[#allocation0]]
  $region45: #{tpu_custom_call.1} parent=0
    _
  %s5 = ssub.s32 1, %s3
  %s6 = scalar_select 0, %s5, %s3
  $region1: #{tpu_custom_call.1} parent=0
    #allocation2 [shape = 'u8[1048576]{0}', space=vmem, size = 0x100000, scoped, tag = 'input window, operand 0']
    #allocation3 [shape = 's32[2]{0}', space=sflag, size = 0x8, scoped, tag = 'scoped memory for tpu_custom_call.1']
    #allocation4 [shape = 's32[2]{0}', space=sflag, size = 0x8, scoped, tag = 'scoped memory for tpu_custom_call.1']
    #allocation5 [shape = 'u8[1048576]{0}', space=vmem, size = 0x100000, scoped, tag = 'output window, operand 0']
    %7 = vsyncpa [#allocation3], 0
    %s8 = scalar_lea.sflag [#allocation3], 1
    %9 = vsyncpa %s8, 0
    %10 = vsyncpa [#allocation4], 0
    %s11 = scalar_lea.sflag [#allocation4], 1
    %12 = vsyncpa %s11, 0
    loop: start=0, step=1, limit=4
    $region2: #{tpu_custom_call.1} parent=1 // loop_pre_header
      _
    $region3: #{tpu_custom_call.1} parent=1 // loop_header
      %s14 = sphi 0, %s18
      %p15 = scmp.ge.s32.totalorder %s14, 4
      %s24 = sphi 0, %s26
      %s27 = sphi 0, %s24
      %s28 = sphi 0, %s27
      %s44 = sphi 0, %s28
      %s50 = sphi 0, %s52
      %s53 = sphi 0, %s50
      %s54 = sphi 0, %s53
      %s70 = sphi 0, %s54
      %s76 = sphi 0, %s78
      %s79 = sphi 0, %s76
      %s80 = sphi 0, %s79
      %s96 = sphi 0, %s80
    $region4: #{tpu_custom_call.1} parent=1 // loop_header_branch
      %17 = sbr.rel (%p15) target = $region8
    $region5: #{tpu_custom_call.1} parent=1 // loop_body
      %s19 = ssub.s32 %s14, 1
      %s20 = ssub.s32 %s14, 2
      %s21 = sadd.s32 %s14, 1
      %s22 = ssub.s32 %s14, %s21
      %p23 = scmp.eq.s32.totalorder %s22, 0
      %s25 = sadd.s32 %s24, 1
      %s26 = scalar_select %p23, %s24, %s25
      %p29 = pneg %p23
      %p30 = scmp.eq.s32.totalorder %s14, 1
      %p31 = por %p29, %p30
      %p32 = scmp.ne.s32.totalorder %s24, %s27
      %p33 = scmp.eq.s32.totalorder %s14, 0
      %p34 = por %p32, %p33
      %p35 = scmp.ne.s32.totalorder %s24, %s27
      %p36 = scmp.eq.s32.totalorder %s19, 1
      %p37 = por %p35, %p36
      %p38 = scmp.ne.s32.totalorder %s27, %s28
      %p39 = scmp.eq.s32.totalorder %s19, 0
      %p40 = por %p38, %p39
      %p41 = scmp.ne.s32.totalorder %s27, %s28
      %p42 = scmp.eq.s32.totalorder %s20, 1
      %p43 = por %p41, %p42
      %p45 = scmp.ne.s32.totalorder %s28, %s44
      %p46 = scmp.eq.s32.totalorder %s20, 0
      %p47 = por %p45, %p46
      %s48 = ssub.s32 %s14, %s21
      %p49 = scmp.eq.s32.totalorder %s48, 0
      %s51 = sadd.s32 %s50, 1
      %s52 = scalar_select %p49, %s50, %s51
      %p55 = pneg %p49
      %p56 = scmp.eq.s32.totalorder %s14, 1
      %p57 = por %p55, %p56
      %p58 = scmp.ne.s32.totalorder %s50, %s53
      %p59 = scmp.eq.s32.totalorder %s14, 0
      %p60 = por %p58, %p59
      %p61 = scmp.ne.s32.totalorder %s50, %s53
      %p62 = scmp.eq.s32.totalorder %s19, 1
      %p63 = por %p61, %p62
      %p64 = scmp.ne.s32.totalorder %s53, %s54
      %p65 = scmp.eq.s32.totalorder %s19, 0
      %p66 = por %p64, %p65
      %p67 = scmp.ne.s32.totalorder %s53, %s54
      %p68 = scmp.eq.s32.totalorder %s20, 1
      %p69 = por %p67, %p68
      %p71 = scmp.ne.s32.totalorder %s54, %s70
      %p72 = scmp.eq.s32.totalorder %s20, 0
      %p73 = por %p71, %p72
      %s74 = ssub.s32 %s14, %s21
      %p75 = scmp.eq.s32.totalorder %s74, 0
      %s77 = sadd.s32 %s76, 1
      %s78 = scalar_select %p75, %s76, %s77
      %p81 = pneg %p75
      %p82 = scmp.eq.s32.totalorder %s14, 1
      %p83 = por %p81, %p82
      %p84 = scmp.ne.s32.totalorder %s76, %s79
      %p85 = scmp.eq.s32.totalorder %s14, 0
      %p86 = por %p84, %p85
      %p87 = scmp.ne.s32.totalorder %s76, %s79
      %p88 = scmp.eq.s32.totalorder %s19, 1
      %p89 = por %p87, %p88
      %p90 = scmp.ne.s32.totalorder %s79, %s80
      %p91 = scmp.eq.s32.totalorder %s19, 0
      %p92 = por %p90, %p91
      %p93 = scmp.ne.s32.totalorder %s79, %s80
      %p94 = scmp.eq.s32.totalorder %s20, 1
      %p95 = por %p93, %p94
      %p97 = scmp.ne.s32.totalorder %s80, %s96
      %p98 = scmp.eq.s32.totalorder %s20, 0
      %p99 = por %p97, %p98
      %p100 = scmp.le.s32.totalorder 1, %s14
      %p101 = scmp.lt.s32.totalorder %s14, 3
      %p102 = pnand %p100, %p101
      %p103 = pneg %p102
      // Predicated region
      $region9: #{tpu_custom_call.1} parent=5 // pred_check
        _
      $region10: #{tpu_custom_call.1} parent=5 // pred_check_branch
        %105 = sbr.rel (%p102) target = $region12
      $region11: #{tpu_custom_call.1} parent=5 // pred_region
        %s106 = ssub.s32 %s14, 1
      $region12: #{tpu_custom_call.1} parent=5 // pred_fallthru
        _
      %p107 = scmp.lt.s32.totalorder %s14, 2
      // Predicated region
      $region13: #{tpu_custom_call.1} parent=5 // pred_check
        %p108 = pneg %p107
      $region14: #{tpu_custom_call.1} parent=5 // pred_check_branch
        %110 = sbr.rel (%p108) target = $region16
      $region15: #{tpu_custom_call.1} parent=5 // pred_region
        // Predicated region
        $region17: #{tpu_custom_call.1} parent=15 // pred_check
          %p111 = pneg %p34
        $region18: #{tpu_custom_call.1} parent=15 // pred_check_branch
          %113 = sbr.rel (%p111) target = $region20
        $region19: #{tpu_custom_call.1} parent=15 // pred_region
          %s114 = sand.u32 %s24, 1
          %s115 = scalar_lea.sflag [#allocation3], %s114
          %s116 = sand.u32 %s24, 1
          %s117 = smul.addr %s116, 1024
          %s118 = scalar_lea.vmem [#allocation2], %s117
          %s119 = smul.u32 16, %s14
          %121 = vsyncadd %s115, 0
          %s122 = smul.addr %s119, 8
          %s123 = smul.addr %s122, 8
          %s124 = scalar_lea.hbm %s0, %s123
          %s125 = sshll.u32 %s124, 4
          %s126 = int_to_ptr.hbm [resolvable:$true] %s125
          %s127 = sshll.u32 %s118, 4
          %s128 = int_to_ptr.vmem [resolvable:$true] %s127
          %133 = dma.hbm_to_vmem [thread:$0]  %s126, 16384, %s128, %s115, 1024, 1024, 64
        $region20: #{tpu_custom_call.1} parent=15 // pred_fallthru
          _
        // Predicated region
        $region21: #{tpu_custom_call.1} parent=15 // pred_check
          %p134 = pneg %p60
        $region22: #{tpu_custom_call.1} parent=15 // pred_check_branch
          %136 = sbr.rel (%p134) target = $region24
        $region23: #{tpu_custom_call.1} parent=15 // pred_region
          %s137 = smul.u32 16, %s14
          %p138 = scmp.lt.s32.totalorder %s137, 63
          %s139 = scalar_select %p138, %s137, 63
          %s140 = smul.addr %s139, 2
          %s141 = smul.addr %s140, 8
          %s142 = scalar_lea.vmem %s1, %s141
          %s143 = smul.u32 16, %s14
        $region24: #{tpu_custom_call.1} parent=15 // pred_fallthru
          _
      $region16: #{tpu_custom_call.1} parent=5 // pred_fallthru
        _
      %p144 = scmp.le.s32.totalorder 1, %s14
      %p145 = scmp.lt.s32.totalorder %s14, 3
      %p146 = pnand %p144, %p145
      %p147 = pneg %p146
      // Predicated region
      $region25: #{tpu_custom_call.1} parent=5 // pred_check
        _
      $region26: #{tpu_custom_call.1} parent=5 // pred_check_branch
        %149 = sbr.rel (%p146) target = $region28
      $region27: #{tpu_custom_call.1} parent=5 // pred_region
        %s150 = ssub.s32 %s14, 1
        %s151 = sand.u32 %s27, 1
        %s152 = scalar_lea.sflag [#allocation3], %s151
        %s153 = sand.u32 %s27, 1
        %s154 = smul.addr %s153, 1024
        %s155 = scalar_lea.vmem [#allocation2], %s154
        // Predicated region
        $region29: #{tpu_custom_call.1} parent=27 // pred_check
          %p156 = pneg %p40
        $region30: #{tpu_custom_call.1} parent=27 // pred_check_branch
          %158 = sbr.rel (%p156) target = $region32
        $region31: #{tpu_custom_call.1} parent=27 // pred_region
          %160 = dma.done %s152, 16384
        $region32: #{tpu_custom_call.1} parent=27 // pred_fallthru
          _
        %s161 = sand.u32 %s27, 1
        %s162 = scalar_lea.sflag [#allocation3], %s161
        %s163 = sand.u32 %s27, 1
        %s164 = smul.addr %s163, 1024
        %s165 = scalar_lea.vmem [#allocation2], %s164
        %p166 = pneg %p40
        %p167 = pneg %p37
        %s168 = smul.u32 16, %s19
        %p169 = scmp.lt.s32.totalorder %s168, 63
        %s170 = scalar_select %p169, %s168, 63
        %s171 = smul.addr %s170, 2
        %s172 = smul.addr %s171, 8
        %s173 = scalar_lea.vmem %s1, %s172
        %p174 = pneg %p66
        %p175 = pneg %p63
        %p176 = pneg %p92
        %p177 = pneg %p89
        %s178 = sand.u32 %s79, 1
        %s179 = scalar_lea.sflag [#allocation4], %s178
        %s180 = sand.u32 %s79, 1
        %s181 = smul.addr %s180, 1024
        %s182 = scalar_lea.vmem [#allocation5], %s181
        %s183 = smul.u32 16, %s19
        %s184 = smul.u32 16, %s19
        %p185 = scmp.lt.s32.totalorder %s184, 63
        %s186 = scalar_select %p185, %s184, 63
        %s187 = smul.addr %s186, 2
        %s188 = smul.addr %s187, 8
        %s189 = scalar_lea.vmem %s1, %s188
        %s190 = smul.u32 16, %s19
        %s191 = smul.u32 16, %s19
        %v192 = vld [vmem:[%s189] sm:$0xff]
        %v193 = vld [vmem:[%s189 + $0x8] sm:$0xff]
        %v194 = vld [vmem:[%s189 + $0x10] sm:$0xff]
        %v195 = vld [vmem:[%s189 + $0x18] sm:$0xff]
        %v196 = vld [vmem:[%s189 + $0x20] sm:$0xff]
        %v197 = vld [vmem:[%s189 + $0x28] sm:$0xff]
        %v198 = vld [vmem:[%s189 + $0x30] sm:$0xff]
        %v199 = vld [vmem:[%s189 + $0x38] sm:$0xff]
        %v200 = vld [vmem:[%s189 + $0x40] sm:$0xff]
        %v201 = vld [vmem:[%s189 + $0x48] sm:$0xff]
        %v202 = vld [vmem:[%s189 + $0x50] sm:$0xff]
        %v203 = vld [vmem:[%s189 + $0x58] sm:$0xff]
        %v204 = vld [vmem:[%s189 + $0x60] sm:$0xff]
        %v205 = vld [vmem:[%s189 + $0x68] sm:$0xff]
        %v206 = vld [vmem:[%s189 + $0x70] sm:$0xff]
        %v207 = vld [vmem:[%s189 + $0x78] sm:$0xff]
        %v208 = vld [vmem:[%s189 + $0x80] sm:$0xff]
        %v209 = vld [vmem:[%s189 + $0x88] sm:$0xff]
        %v210 = vld [vmem:[%s189 + $0x90] sm:$0xff]
        %v211 = vld [vmem:[%s189 + $0x98] sm:$0xff]
        %v212 = vld [vmem:[%s189 + $0xa0] sm:$0xff]
        %v213 = vld [vmem:[%s189 + $0xa8] sm:$0xff]
        %v214 = vld [vmem:[%s189 + $0xb0] sm:$0xff]
        %v215 = vld [vmem:[%s189 + $0xb8] sm:$0xff]
        %v216 = vld [vmem:[%s189 + $0xc0] sm:$0xff]
        %v217 = vld [vmem:[%s189 + $0xc8] sm:$0xff]
        %v218 = vld [vmem:[%s189 + $0xd0] sm:$0xff]
        %v219 = vld [vmem:[%s189 + $0xd8] sm:$0xff]
        %v220 = vld [vmem:[%s189 + $0xe0] sm:$0xff]
        %v221 = vld [vmem:[%s189 + $0xe8] sm:$0xff]
        %v222 = vld [vmem:[%s189 + $0xf0] sm:$0xff]
        %v223 = vld [vmem:[%s189 + $0xf8] sm:$0xff]
        %v224 = vld [vmem:[%s155] sm:$0xff]
        %v225 = vld [vmem:[%s155 + $0x8] sm:$0xff]
        %v226 = vld [vmem:[%s155 + $0x10] sm:$0xff]
        %v227 = vld [vmem:[%s155 + $0x18] sm:$0xff]
        %v228 = vld [vmem:[%s155 + $0x20] sm:$0xff]
        %v229 = vld [vmem:[%s155 + $0x28] sm:$0xff]
        %v230 = vld [vmem:[%s155 + $0x30] sm:$0xff]
        %v231 = vld [vmem:[%s155 + $0x38] sm:$0xff]
        %v232 = vld [vmem:[%s155 + $0x40] sm:$0xff]
        %v233 = vld [vmem:[%s155 + $0x48] sm:$0xff]
        %v234 = vld [vmem:[%s155 + $0x50] sm:$0xff]
        %v235 = vld [vmem:[%s155 + $0x58] sm:$0xff]
        %v236 = vld [vmem:[%s155 + $0x60] sm:$0xff]
        %v237 = vld [vmem:[%s155 + $0x68] sm:$0xff]
        %v238 = vld [vmem:[%s155 + $0x70] sm:$0xff]
        %v239 = vld [vmem:[%s155 + $0x78] sm:$0xff]
        %v240 = vld [vmem:[%s155 + $0x80] sm:$0xff]
        %v241 = vld [vmem:[%s155 + $0x88] sm:$0xff]
        %v242 = vld [vmem:[%s155 + $0x90] sm:$0xff]
        %v243 = vld [vmem:[%s155 + $0x98] sm:$0xff]
        %v244 = vld [vmem:[%s155 + $0xa0] sm:$0xff]
        %v245 = vld [vmem:[%s155 + $0xa8] sm:$0xff]
        %v246 = vld [vmem:[%s155 + $0xb0] sm:$0xff]
        %v247 = vld [vmem:[%s155 + $0xb8] sm:$0xff]
        %v248 = vld [vmem:[%s155 + $0xc0] sm:$0xff]
        %v249 = vld [vmem:[%s155 + $0xc8] sm:$0xff]
        %v250 = vld [vmem:[%s155 + $0xd0] sm:$0xff]
        %v251 = vld [vmem:[%s155 + $0xd8] sm:$0xff]
        %v252 = vld [vmem:[%s155 + $0xe0] sm:$0xff]
        %v253 = vld [vmem:[%s155 + $0xe8] sm:$0xff]
        %v254 = vld [vmem:[%s155 + $0xf0] sm:$0xff]
        %v255 = vld [vmem:[%s155 + $0xf8] sm:$0xff]
        %v256 = vld [vmem:[%s155 + $0x100] sm:$0xff]
        %v257 = vld [vmem:[%s155 + $0x108] sm:$0xff]
        %v258 = vld [vmem:[%s155 + $0x110] sm:$0xff]
        %v259 = vld [vmem:[%s155 + $0x118] sm:$0xff]
        %v260 = vld [vmem:[%s155 + $0x120] sm:$0xff]
        %v261 = vld [vmem:[%s155 + $0x128] sm:$0xff]
        %v262 = vld [vmem:[%s155 + $0x130] sm:$0xff]
        %v263 = vld [vmem:[%s155 + $0x138] sm:$0xff]
        %v264 = vld [vmem:[%s155 + $0x140] sm:$0xff]
        %v265 = vld [vmem:[%s155 + $0x148] sm:$0xff]
        %v266 = vld [vmem:[%s155 + $0x150] sm:$0xff]
        %v267 = vld [vmem:[%s155 + $0x158] sm:$0xff]
        %v268 = vld [vmem:[%s155 + $0x160] sm:$0xff]
        %v269 = vld [vmem:[%s155 + $0x168] sm:$0xff]
        %v270 = vld [vmem:[%s155 + $0x170] sm:$0xff]
        %v271 = vld [vmem:[%s155 + $0x178] sm:$0xff]
        %v272 = vld [vmem:[%s155 + $0x180] sm:$0xff]
        %v273 = vld [vmem:[%s155 + $0x188] sm:$0xff]
        %v274 = vld [vmem:[%s155 + $0x190] sm:$0xff]
        %v275 = vld [vmem:[%s155 + $0x198] sm:$0xff]
        %v276 = vld [vmem:[%s155 + $0x1a0] sm:$0xff]
        %v277 = vld [vmem:[%s155 + $0x1a8] sm:$0xff]
        %v278 = vld [vmem:[%s155 + $0x1b0] sm:$0xff]
        %v279 = vld [vmem:[%s155 + $0x1b8] sm:$0xff]
        %v280 = vld [vmem:[%s155 + $0x1c0] sm:$0xff]
        %v281 = vld [vmem:[%s155 + $0x1c8] sm:$0xff]
        %v282 = vld [vmem:[%s155 + $0x1d0] sm:$0xff]
        %v283 = vld [vmem:[%s155 + $0x1d8] sm:$0xff]
        %v284 = vld [vmem:[%s155 + $0x1e0] sm:$0xff]
        %v285 = vld [vmem:[%s155 + $0x1e8] sm:$0xff]
        %v286 = vld [vmem:[%s155 + $0x1f0] sm:$0xff]
        %v287 = vld [vmem:[%s155 + $0x1f8] sm:$0xff]
        %v288 = vld [vmem:[%s155 + $0x200] sm:$0xff]
        %v289 = vld [vmem:[%s155 + $0x208] sm:$0xff]
        %v290 = vld [vmem:[%s155 + $0x210] sm:$0xff]
        %v291 = vld [vmem:[%s155 + $0x218] sm:$0xff]
        %v292 = vld [vmem:[%s155 + $0x220] sm:$0xff]
        %v293 = vld [vmem:[%s155 + $0x228] sm:$0xff]
        %v294 = vld [vmem:[%s155 + $0x230] sm:$0xff]
        %v295 = vld [vmem:[%s155 + $0x238] sm:$0xff]
        %v296 = vld [vmem:[%s155 + $0x240] sm:$0xff]
        %v297 = vld [vmem:[%s155 + $0x248] sm:$0xff]
        %v298 = vld [vmem:[%s155 + $0x250] sm:$0xff]
        %v299 = vld [vmem:[%s155 + $0x258] sm:$0xff]
        %v300 = vld [vmem:[%s155 + $0x260] sm:$0xff]
        %v301 = vld [vmem:[%s155 + $0x268] sm:$0xff]
        %v302 = vld [vmem:[%s155 + $0x270] sm:$0xff]
        %v303 = vld [vmem:[%s155 + $0x278] sm:$0xff]
        %v304 = vld [vmem:[%s155 + $0x280] sm:$0xff]
        %v305 = vld [vmem:[%s155 + $0x288] sm:$0xff]
        %v306 = vld [vmem:[%s155 + $0x290] sm:$0xff]
        %v307 = vld [vmem:[%s155 + $0x298] sm:$0xff]
        %v308 = vld [vmem:[%s155 + $0x2a0] sm:$0xff]
        %v309 = vld [vmem:[%s155 + $0x2a8] sm:$0xff]
        %v310 = vld [vmem:[%s155 + $0x2b0] sm:$0xff]
        %v311 = vld [vmem:[%s155 + $0x2b8] sm:$0xff]
        %v312 = vld [vmem:[%s155 + $0x2c0] sm:$0xff]
        %v313 = vld [vmem:[%s155 + $0x2c8] sm:$0xff]
        %v314 = vld [vmem:[%s155 + $0x2d0] sm:$0xff]
        %v315 = vld [vmem:[%s155 + $0x2d8] sm:$0xff]
        %v316 = vld [vmem:[%s155 + $0x2e0] sm:$0xff]
        %v317 = vld [vmem:[%s155 + $0x2e8] sm:$0xff]
        %v318 = vld [vmem:[%s155 + $0x2f0] sm:$0xff]
        %v319 = vld [vmem:[%s155 + $0x2f8] sm:$0xff]
        %v320 = vld [vmem:[%s155 + $0x300] sm:$0xff]
        %v321 = vld [vmem:[%s155 + $0x308] sm:$0xff]
        %v322 = vld [vmem:[%s155 + $0x310] sm:$0xff]
        %v323 = vld [vmem:[%s155 + $0x318] sm:$0xff]
        %v324 = vld [vmem:[%s155 + $0x320] sm:$0xff]
        %v325 = vld [vmem:[%s155 + $0x328] sm:$0xff]
        %v326 = vld [vmem:[%s155 + $0x330] sm:$0xff]
        %v327 = vld [vmem:[%s155 + $0x338] sm:$0xff]
        %v328 = vld [vmem:[%s155 + $0x340] sm:$0xff]
        %v329 = vld [vmem:[%s155 + $0x348] sm:$0xff]
        %v330 = vld [vmem:[%s155 + $0x350] sm:$0xff]
        %v331 = vld [vmem:[%s155 + $0x358] sm:$0xff]
        %v332 = vld [vmem:[%s155 + $0x360] sm:$0xff]
        %v333 = vld [vmem:[%s155 + $0x368] sm:$0xff]
        %v334 = vld [vmem:[%s155 + $0x370] sm:$0xff]
        %v335 = vld [vmem:[%s155 + $0x378] sm:$0xff]
        %v336 = vld [vmem:[%s155 + $0x380] sm:$0xff]
        %v337 = vld [vmem:[%s155 + $0x388] sm:$0xff]
        %v338 = vld [vmem:[%s155 + $0x390] sm:$0xff]
        %v339 = vld [vmem:[%s155 + $0x398] sm:$0xff]
        %v340 = vld [vmem:[%s155 + $0x3a0] sm:$0xff]
        %v341 = vld [vmem:[%s155 + $0x3a8] sm:$0xff]
        %v342 = vld [vmem:[%s155 + $0x3b0] sm:$0xff]
        %v343 = vld [vmem:[%s155 + $0x3b8] sm:$0xff]
        %v344 = vld [vmem:[%s155 + $0x3c0] sm:$0xff]
        %v345 = vld [vmem:[%s155 + $0x3c8] sm:$0xff]
        %v346 = vld [vmem:[%s155 + $0x3d0] sm:$0xff]
        %v347 = vld [vmem:[%s155 + $0x3d8] sm:$0xff]
        %v348 = vld [vmem:[%s155 + $0x3e0] sm:$0xff]
        %v349 = vld [vmem:[%s155 + $0x3e8] sm:$0xff]
        %v350 = vld [vmem:[%s155 + $0x3f0] sm:$0xff]
        %v351 = vld [vmem:[%s155 + $0x3f8] sm:$0xff]
        %v352 = vadd.f32 %v224, %v192
        %v353 = vadd.f32 %v225, %v193
        %v354 = vadd.f32 %v226, %v192
        %v355 = vadd.f32 %v227, %v193
        %v356 = vadd.f32 %v228, %v192
        %v357 = vadd.f32 %v229, %v193
        %v358 = vadd.f32 %v230, %v192
        %v359 = vadd.f32 %v231, %v193
        %v360 = vadd.f32 %v232, %v194
        %v361 = vadd.f32 %v233, %v195
        %v362 = vadd.f32 %v234, %v194
        %v363 = vadd.f32 %v235, %v195
        %v364 = vadd.f32 %v236, %v194
        %v365 = vadd.f32 %v237, %v195
        %v366 = vadd.f32 %v238, %v194
        %v367 = vadd.f32 %v239, %v195
        %v368 = vadd.f32 %v240, %v196
        %v369 = vadd.f32 %v241, %v197
        %v370 = vadd.f32 %v242, %v196
        %v371 = vadd.f32 %v243, %v197
        %v372 = vadd.f32 %v244, %v196
        %v373 = vadd.f32 %v245, %v197
        %v374 = vadd.f32 %v246, %v196
        %v375 = vadd.f32 %v247, %v197
        %v376 = vadd.f32 %v248, %v198
        %v377 = vadd.f32 %v249, %v199
        %v378 = vadd.f32 %v250, %v198
        %v379 = vadd.f32 %v251, %v199
        %v380 = vadd.f32 %v252, %v198
        %v381 = vadd.f32 %v253, %v199
        %v382 = vadd.f32 %v254, %v198
        %v383 = vadd.f32 %v255, %v199
        %v384 = vadd.f32 %v256, %v200
        %v385 = vadd.f32 %v257, %v201
        %v386 = vadd.f32 %v258, %v200
        %v387 = vadd.f32 %v259, %v201
        %v388 = vadd.f32 %v260, %v200
        %v389 = vadd.f32 %v261, %v201
        %v390 = vadd.f32 %v262, %v200
        %v391 = vadd.f32 %v263, %v201
        %v392 = vadd.f32 %v264, %v202
        %v393 = vadd.f32 %v265, %v203
        %v394 = vadd.f32 %v266, %v202
        %v395 = vadd.f32 %v267, %v203
        %v396 = vadd.f32 %v268, %v202
        %v397 = vadd.f32 %v269, %v203
        %v398 = vadd.f32 %v270, %v202
        %v399 = vadd.f32 %v271, %v203
        %v400 = vadd.f32 %v272, %v204
        %v401 = vadd.f32 %v273, %v205
        %v402 = vadd.f32 %v274, %v204
        %v403 = vadd.f32 %v275, %v205
        %v404 = vadd.f32 %v276, %v204
        %v405 = vadd.f32 %v277, %v205
        %v406 = vadd.f32 %v278, %v204
        %v407 = vadd.f32 %v279, %v205
        %v408 = vadd.f32 %v280, %v206
        %v409 = vadd.f32 %v281, %v207
        %v410 = vadd.f32 %v282, %v206
        %v411 = vadd.f32 %v283, %v207
        %v412 = vadd.f32 %v284, %v206
        %v413 = vadd.f32 %v285, %v207
        %v414 = vadd.f32 %v286, %v206
        %v415 = vadd.f32 %v287, %v207
        %v416 = vadd.f32 %v288, %v208
        %v417 = vadd.f32 %v289, %v209
        %v418 = vadd.f32 %v290, %v208
        %v419 = vadd.f32 %v291, %v209
        %v420 = vadd.f32 %v292, %v208
        %v421 = vadd.f32 %v293, %v209
        %v422 = vadd.f32 %v294, %v208
        %v423 = vadd.f32 %v295, %v209
        %v424 = vadd.f32 %v296, %v210
        %v425 = vadd.f32 %v297, %v211
        %v426 = vadd.f32 %v298, %v210
        %v427 = vadd.f32 %v299, %v211
        %v428 = vadd.f32 %v300, %v210
        %v429 = vadd.f32 %v301, %v211
        %v430 = vadd.f32 %v302, %v210
        %v431 = vadd.f32 %v303, %v211
        %v432 = vadd.f32 %v304, %v212
        %v433 = vadd.f32 %v305, %v213
        %v434 = vadd.f32 %v306, %v212
        %v435 = vadd.f32 %v307, %v213
        %v436 = vadd.f32 %v308, %v212
        %v437 = vadd.f32 %v309, %v213
        %v438 = vadd.f32 %v310, %v212
        %v439 = vadd.f32 %v311, %v213
        %v440 = vadd.f32 %v312, %v214
        %v441 = vadd.f32 %v313, %v215
        %v442 = vadd.f32 %v314, %v214
        %v443 = vadd.f32 %v315, %v215
        %v444 = vadd.f32 %v316, %v214
        %v445 = vadd.f32 %v317, %v215
        %v446 = vadd.f32 %v318, %v214
        %v447 = vadd.f32 %v319, %v215
        %v448 = vadd.f32 %v320, %v216
        %v449 = vadd.f32 %v321, %v217
        %v450 = vadd.f32 %v322, %v216
        %v451 = vadd.f32 %v323, %v217
        %v452 = vadd.f32 %v324, %v216
        %v453 = vadd.f32 %v325, %v217
        %v454 = vadd.f32 %v326, %v216
        %v455 = vadd.f32 %v327, %v217
        %v456 = vadd.f32 %v328, %v218
        %v457 = vadd.f32 %v329, %v219
        %v458 = vadd.f32 %v330, %v218
        %v459 = vadd.f32 %v331, %v219
        %v460 = vadd.f32 %v332, %v218
        %v461 = vadd.f32 %v333, %v219
        %v462 = vadd.f32 %v334, %v218
        %v463 = vadd.f32 %v335, %v219
        %v464 = vadd.f32 %v336, %v220
        %v465 = vadd.f32 %v337, %v221
        %v466 = vadd.f32 %v338, %v220
        %v467 = vadd.f32 %v339, %v221
        %v468 = vadd.f32 %v340, %v220
        %v469 = vadd.f32 %v341, %v221
        %v470 = vadd.f32 %v342, %v220
        %v471 = vadd.f32 %v343, %v221
        %v472 = vadd.f32 %v344, %v222
        %v473 = vadd.f32 %v345, %v223
        %v474 = vadd.f32 %v346, %v222
        %v475 = vadd.f32 %v347, %v223
        %v476 = vadd.f32 %v348, %v222
        %v477 = vadd.f32 %v349, %v223
        %v478 = vadd.f32 %v350, %v222
        %v479 = vadd.f32 %v351, %v223
        %480 = vst [vmem:[%s182] sm:$0xff] %v352
        %481 = vst [vmem:[%s182 + $0x8] sm:$0xff] %v353
        %482 = vst [vmem:[%s182 + $0x10] sm:$0xff] %v354
        %483 = vst [vmem:[%s182 + $0x18] sm:$0xff] %v355
        %484 = vst [vmem:[%s182 + $0x20] sm:$0xff] %v356
        %485 = vst [vmem:[%s182 + $0x28] sm:$0xff] %v357
        %486 = vst [vmem:[%s182 + $0x30] sm:$0xff] %v358
        %487 = vst [vmem:[%s182 + $0x38] sm:$0xff] %v359
        %488 = vst [vmem:[%s182 + $0x40] sm:$0xff] %v360
        %489 = vst [vmem:[%s182 + $0x48] sm:$0xff] %v361
        %490 = vst [vmem:[%s182 + $0x50] sm:$0xff] %v362
        %491 = vst [vmem:[%s182 + $0x58] sm:$0xff] %v363
        %492 = vst [vmem:[%s182 + $0x60] sm:$0xff] %v364
        %493 = vst [vmem:[%s182 + $0x68] sm:$0xff] %v365
        %494 = vst [vmem:[%s182 + $0x70] sm:$0xff] %v366
        %495 = vst [vmem:[%s182 + $0x78] sm:$0xff] %v367
        %496 = vst [vmem:[%s182 + $0x80] sm:$0xff] %v368
        %497 = vst [vmem:[%s182 + $0x88] sm:$0xff] %v369
        %498 = vst [vmem:[%s182 + $0x90] sm:$0xff] %v370
        %499 = vst [vmem:[%s182 + $0x98] sm:$0xff] %v371
        %500 = vst [vmem:[%s182 + $0xa0] sm:$0xff] %v372
        %501 = vst [vmem:[%s182 + $0xa8] sm:$0xff] %v373
        %502 = vst [vmem:[%s182 + $0xb0] sm:$0xff] %v374
        %503 = vst [vmem:[%s182 + $0xb8] sm:$0xff] %v375
        %504 = vst [vmem:[%s182 + $0xc0] sm:$0xff] %v376
        %505 = vst [vmem:[%s182 + $0xc8] sm:$0xff] %v377
        %506 = vst [vmem:[%s182 + $0xd0] sm:$0xff] %v378
        %507 = vst [vmem:[%s182 + $0xd8] sm:$0xff] %v379
        %508 = vst [vmem:[%s182 + $0xe0] sm:$0xff] %v380
        %509 = vst [vmem:[%s182 + $0xe8] sm:$0xff] %v381
        %510 = vst [vmem:[%s182 + $0xf0] sm:$0xff] %v382
        %511 = vst [vmem:[%s182 + $0xf8] sm:$0xff] %v383
        %512 = vst [vmem:[%s182 + $0x100] sm:$0xff] %v384
        %513 = vst [vmem:[%s182 + $0x108] sm:$0xff] %v385
        %514 = vst [vmem:[%s182 + $0x110] sm:$0xff] %v386
        %515 = vst [vmem:[%s182 + $0x118] sm:$0xff] %v387
        %516 = vst [vmem:[%s182 + $0x120] sm:$0xff] %v388
        %517 = vst [vmem:[%s182 + $0x128] sm:$0xff] %v389
        %518 = vst [vmem:[%s182 + $0x130] sm:$0xff] %v390
        %519 = vst [vmem:[%s182 + $0x138] sm:$0xff] %v391
        %520 = vst [vmem:[%s182 + $0x140] sm:$0xff] %v392
        %521 = vst [vmem:[%s182 + $0x148] sm:$0xff] %v393
        %522 = vst [vmem:[%s182 + $0x150] sm:$0xff] %v394
        %523 = vst [vmem:[%s182 + $0x158] sm:$0xff] %v395
        %524 = vst [vmem:[%s182 + $0x160] sm:$0xff] %v396
        %525 = vst [vmem:[%s182 + $0x168] sm:$0xff] %v397
        %526 = vst [vmem:[%s182 + $0x170] sm:$0xff] %v398
        %527 = vst [vmem:[%s182 + $0x178] sm:$0xff] %v399
        %528 = vst [vmem:[%s182 + $0x180] sm:$0xff] %v400
        %529 = vst [vmem:[%s182 + $0x188] sm:$0xff] %v401
        %530 = vst [vmem:[%s182 + $0x190] sm:$0xff] %v402
        %531 = vst [vmem:[%s182 + $0x198] sm:$0xff] %v403
        %532 = vst [vmem:[%s182 + $0x1a0] sm:$0xff] %v404
        %533 = vst [vmem:[%s182 + $0x1a8] sm:$0xff] %v405
        %534 = vst [vmem:[%s182 + $0x1b0] sm:$0xff] %v406
        %535 = vst [vmem:[%s182 + $0x1b8] sm:$0xff] %v407
        %536 = vst [vmem:[%s182 + $0x1c0] sm:$0xff] %v408
        %537 = vst [vmem:[%s182 + $0x1c8] sm:$0xff] %v409
        %538 = vst [vmem:[%s182 + $0x1d0] sm:$0xff] %v410
        %539 = vst [vmem:[%s182 + $0x1d8] sm:$0xff] %v411
        %540 = vst [vmem:[%s182 + $0x1e0] sm:$0xff] %v412
        %541 = vst [vmem:[%s182 + $0x1e8] sm:$0xff] %v413
        %542 = vst [vmem:[%s182 + $0x1f0] sm:$0xff] %v414
        %543 = vst [vmem:[%s182 + $0x1f8] sm:$0xff] %v415
        %544 = vst [vmem:[%s182 + $0x200] sm:$0xff] %v416
        %545 = vst [vmem:[%s182 + $0x208] sm:$0xff] %v417
        %546 = vst [vmem:[%s182 + $0x210] sm:$0xff] %v418
        %547 = vst [vmem:[%s182 + $0x218] sm:$0xff] %v419
        %548 = vst [vmem:[%s182 + $0x220] sm:$0xff] %v420
        %549 = vst [vmem:[%s182 + $0x228] sm:$0xff] %v421
        %550 = vst [vmem:[%s182 + $0x230] sm:$0xff] %v422
        %551 = vst [vmem:[%s182 + $0x238] sm:$0xff] %v423
        %552 = vst [vmem:[%s182 + $0x240] sm:$0xff] %v424
        %553 = vst [vmem:[%s182 + $0x248] sm:$0xff] %v425
        %554 = vst [vmem:[%s182 + $0x250] sm:$0xff] %v426
        %555 = vst [vmem:[%s182 + $0x258] sm:$0xff] %v427
        %556 = vst [vmem:[%s182 + $0x260] sm:$0xff] %v428
        %557 = vst [vmem:[%s182 + $0x268] sm:$0xff] %v429
        %558 = vst [vmem:[%s182 + $0x270] sm:$0xff] %v430
        %559 = vst [vmem:[%s182 + $0x278] sm:$0xff] %v431
        %560 = vst [vmem:[%s182 + $0x280] sm:$0xff] %v432
        %561 = vst [vmem:[%s182 + $0x288] sm:$0xff] %v433
        %562 = vst [vmem:[%s182 + $0x290] sm:$0xff] %v434
        %563 = vst [vmem:[%s182 + $0x298] sm:$0xff] %v435
        %564 = vst [vmem:[%s182 + $0x2a0] sm:$0xff] %v436
        %565 = vst [vmem:[%s182 + $0x2a8] sm:$0xff] %v437
        %566 = vst [vmem:[%s182 + $0x2b0] sm:$0xff] %v438
        %567 = vst [vmem:[%s182 + $0x2b8] sm:$0xff] %v439
        %568 = vst [vmem:[%s182 + $0x2c0] sm:$0xff] %v440
        %569 = vst [vmem:[%s182 + $0x2c8] sm:$0xff] %v441
        %570 = vst [vmem:[%s182 + $0x2d0] sm:$0xff] %v442
        %571 = vst [vmem:[%s182 + $0x2d8] sm:$0xff] %v443
        %572 = vst [vmem:[%s182 + $0x2e0] sm:$0xff] %v444
        %573 = vst [vmem:[%s182 + $0x2e8] sm:$0xff] %v445
        %574 = vst [vmem:[%s182 + $0x2f0] sm:$0xff] %v446
        %575 = vst [vmem:[%s182 + $0x2f8] sm:$0xff] %v447
        %576 = vst [vmem:[%s182 + $0x300] sm:$0xff] %v448
        %577 = vst [vmem:[%s182 + $0x308] sm:$0xff] %v449
        %578 = vst [vmem:[%s182 + $0x310] sm:$0xff] %v450
        %579 = vst [vmem:[%s182 + $0x318] sm:$0xff] %v451
        %580 = vst [vmem:[%s182 + $0x320] sm:$0xff] %v452
        %581 = vst [vmem:[%s182 + $0x328] sm:$0xff] %v453
        %582 = vst [vmem:[%s182 + $0x330] sm:$0xff] %v454
        %583 = vst [vmem:[%s182 + $0x338] sm:$0xff] %v455
        %584 = vst [vmem:[%s182 + $0x340] sm:$0xff] %v456
        %585 = vst [vmem:[%s182 + $0x348] sm:$0xff] %v457
        %586 = vst [vmem:[%s182 + $0x350] sm:$0xff] %v458
        %587 = vst [vmem:[%s182 + $0x358] sm:$0xff] %v459
        %588 = vst [vmem:[%s182 + $0x360] sm:$0xff] %v460
        %589 = vst [vmem:[%s182 + $0x368] sm:$0xff] %v461
        %590 = vst [vmem:[%s182 + $0x370] sm:$0xff] %v462
        %591 = vst [vmem:[%s182 + $0x378] sm:$0xff] %v463
        %592 = vst [vmem:[%s182 + $0x380] sm:$0xff] %v464
        %593 = vst [vmem:[%s182 + $0x388] sm:$0xff] %v465
        %594 = vst [vmem:[%s182 + $0x390] sm:$0xff] %v466
        %595 = vst [vmem:[%s182 + $0x398] sm:$0xff] %v467
        %596 = vst [vmem:[%s182 + $0x3a0] sm:$0xff] %v468
        %597 = vst [vmem:[%s182 + $0x3a8] sm:$0xff] %v469
        %598 = vst [vmem:[%s182 + $0x3b0] sm:$0xff] %v470
        %599 = vst [vmem:[%s182 + $0x3b8] sm:$0xff] %v471
        %600 = vst [vmem:[%s182 + $0x3c0] sm:$0xff] %v472
        %601 = vst [vmem:[%s182 + $0x3c8] sm:$0xff] %v473
        %602 = vst [vmem:[%s182 + $0x3d0] sm:$0xff] %v474
        %603 = vst [vmem:[%s182 + $0x3d8] sm:$0xff] %v475
        %604 = vst [vmem:[%s182 + $0x3e0] sm:$0xff] %v476
        %605 = vst [vmem:[%s182 + $0x3e8] sm:$0xff] %v477
        %606 = vst [vmem:[%s182 + $0x3f0] sm:$0xff] %v478
        %607 = vst [vmem:[%s182 + $0x3f8] sm:$0xff] %v479
        %s608 = sand.u32 %s79, 1
        %s609 = scalar_lea.sflag [#allocation4], %s608
        %s610 = sand.u32 %s79, 1
        %s611 = smul.addr %s610, 1024
        %s612 = scalar_lea.vmem [#allocation5], %s611
        // Predicated region
        $region33: #{tpu_custom_call.1} parent=27 // pred_check
          %p613 = pneg %p89
        $region34: #{tpu_custom_call.1} parent=27 // pred_check_branch
          %615 = sbr.rel (%p613) target = $region36
        $region35: #{tpu_custom_call.1} parent=27 // pred_region
          %s616 = smul.u32 16, %s19
          %618 = vsyncadd %s609, 0
          %s619 = smul.addr %s616, 8
          %s620 = smul.addr %s619, 8
          %s621 = scalar_lea.hbm %s2, %s620
          %s622 = sshll.u32 %s612, 4
          %s623 = int_to_ptr.vmem [resolvable:$true] %s622
          %s624 = sshll.u32 %s621, 4
          %s625 = int_to_ptr.hbm [resolvable:$true] %s624
          %630 = dma.vmem_to_hbm [thread:$0]  %s623, 16384, %s625, %s609, 1024, 1024, 64
        $region36: #{tpu_custom_call.1} parent=27 // pred_fallthru
          _
      $region28: #{tpu_custom_call.1} parent=5 // pred_fallthru
        _
      %p631 = scmp.le.s32.totalorder 2, %s14
      // Predicated region
      $region37: #{tpu_custom_call.1} parent=5 // pred_check
        %p632 = pneg %p631
      $region38: #{tpu_custom_call.1} parent=5 // pred_check_branch
        %634 = sbr.rel (%p632) target = $region40
      $region39: #{tpu_custom_call.1} parent=5 // pred_region
        %s635 = ssub.s32 %s14, 2
        // Predicated region
        $region41: #{tpu_custom_call.1} parent=39 // pred_check
          %p636 = pneg %p95
        $region42: #{tpu_custom_call.1} parent=39 // pred_check_branch
          %638 = sbr.rel (%p636) target = $region44
        $region43: #{tpu_custom_call.1} parent=39 // pred_region
          %s639 = sand.u32 %s80, 1
          %s640 = scalar_lea.sflag [#allocation4], %s639
          %s641 = sand.u32 %s80, 1
          %s642 = smul.addr %s641, 1024
          %s643 = scalar_lea.vmem [#allocation5], %s642
          %645 = dma.done %s640, 16384
        $region44: #{tpu_custom_call.1} parent=39 // pred_fallthru
          _
      $region40: #{tpu_custom_call.1} parent=5 // pred_fallthru
        _
    $region6: #{tpu_custom_call.1} parent=1 // loop_footer
      %s18 = sadd.s32 1, %s14
    $region7: #{tpu_custom_call.1} parent=1 // loop_footer_branch
      %13 = sbr.rel target = $region3
    $region8: #{tpu_custom_call.1} parent=1 // loop_exit
      _
    %646 = vsyncpa [#allocation3], 1
    %s647 = scalar_lea.sflag [#allocation3], 1
    %648 = vsyncpa %s647, 1
    %649 = vsyncpa [#allocation4], 1
    %s650 = scalar_lea.sflag [#allocation4], 1
    %651 = vsyncpa %s650, 1

</llo_original>
